<compile_context>
chip_gen: v6e
topology: v6e:2x2x1
jax: 0.10.0
libtpu: 0.0.40
codegen_flags: <defaults>
</compile_context>

<pallas_src>
import functools

import jax
import jax.numpy as jnp
from jax.experimental import pallas as pl
from jax.experimental.pallas import tpu as pltpu


_LANES = 128
_ROW_ALIGN = 32            # int8 native sublane tile (covers f32 / bf16 too)
_MAX_ROWS_PER_TILE = 512   # 512 rows x 128 lanes = 65536 samples per grid step


def _bce_kernel(cw_ref, d_ref, tgt_ref, out_ref):
    """Accumulate weighted binary-CE sums for one batch chunk (all tasks).

    cw_ref:  SMEM (2,)            f32   class weights [w0, w1]
    d_ref:   VMEM [T, TR, 128]          logit difference z1 - z0
    tgt_ref: VMEM [T, TR, 128]    i8    labels in {0, 1}; -1 marks padding
    out_ref: VMEM [2, T]          f32   row 0: sum w[y]*nll, row 1: sum w[y]
             (same block index for every grid step -> resident accumulator)
    """
    @pl.when(pl.program_id(0) == 0)
    def _():
        out_ref[...] = jnp.zeros_like(out_ref)

    d = d_ref[...].astype(jnp.float32)      # [T, TR, 128]
    yi = tgt_ref[...].astype(jnp.int32)     # [T, TR, 128] (cheap i8 -> i32 unpack)

    pos = yi == 1
    valid = yi >= 0

    # 2-class CE == binary CE on d = z1 - z0:
    #   y = 0 -> nll = softplus(d),   y = 1 -> nll = softplus(-d)
    x = jnp.where(pos, -d, d)
    # numerically-stable softplus: max(x, 0) + log(1 + exp(-|x|))
    nll = jnp.maximum(x, 0.0) + jnp.log(1.0 + jnp.exp(-jnp.abs(x)))

    cw0 = cw_ref[0]
    cw1 = cw_ref[1]
    w = jnp.where(valid, jnp.where(pos, cw1, cw0), 0.0)   # per-sample weight

    # Rows (sublane axis) first: plain VALU vreg accumulation; then a single
    # cross-lane XLU reduce per task.
    ws = jnp.sum(jnp.sum(w * nll, axis=1), axis=-1)       # [T]
    wt = jnp.sum(jnp.sum(w, axis=1), axis=-1)             # [T]

    out_ref[0, :] += ws
    out_ref[1, :] += wt


def _pick_tile_rows(rows):
    """Largest multiple of _ROW_ALIGN dividing `rows`, capped at _MAX_ROWS_PER_TILE."""
    if rows <= _MAX_ROWS_PER_TILE:
        return rows
    m = rows // _ROW_ALIGN
    best = 1
    for k in range(1, _MAX_ROWS_PER_TILE // _ROW_ALIGN + 1):
        if m % k == 0:
            best = k
    return best * _ROW_ALIGN


def _fused_weighted_ce(d_stacked, targets_stacked, class_weights):
    """Per-task weighted-mean CE (matches F.cross_entropy(weight=w) semantics).

    d_stacked:       [T, Rp, 128]  logit differences (f32 or bf16)
    targets_stacked: [T, Rp, 128]  int8 labels, -1 = padding
    class_weights:   [2] f32
    returns:         [T] f32 per-task losses
    """
    T, rp, lanes = d_stacked.shape
    assert lanes == _LANES and rp % _ROW_ALIGN == 0
    tr = _pick_tile_rows(rp)
    g = rp // tr

    sums = pl.pallas_call(
        _bce_kernel,
        out_shape=jax.ShapeDtypeStruct((2, T), jnp.float32),
        grid_spec=pltpu.PrefetchScalarGridSpec(
            num_scalar_prefetch=0,
            grid=(g,),
            in_specs=[
                pl.BlockSpec(memory_space=pltpu.MemorySpace.SMEM),
                pl.BlockSpec((T, tr, _LANES), lambda c: (0, c, 0)),
                pl.BlockSpec((T, tr, _LANES), lambda c: (0, c, 0)),
            ],
            out_specs=pl.BlockSpec((2, T), lambda c: (0, 0)),
        ),
        # The output is a resident VMEM accumulator across the batch-chunk axis.
        # TODO(synk): on v7x, shard an explicit leading core axis with
        # pltpu.CORE_PARALLEL to use both TensorCores.
        compiler_params=pltpu.CompilerParams(
            dimension_semantics=("arbitrary",),
        ),
    )(class_weights, d_stacked, targets_stacked)

    ws, wt = sums[0], sums[1]
    safe_wt = jnp.where(wt > 0, wt, 1.0)
    # F.cross_entropy(weight=w): sum_i w[y_i]*nll_i / sum_i w[y_i]
    return jnp.where(wt > 0, ws / safe_wt, 0.0)


def _pack_tasks(logits_list, targets_list, rows):
    """Pack per-task ([B,2] logits, [B] labels) into lane-dense stacked arrays."""
    n_pad = rows * _LANES
    d_dtype = (jnp.bfloat16
               if all(lg.dtype == jnp.bfloat16 for lg in logits_list)
               else jnp.float32)
    d_list, t_list = [], []
    for lg, tg in zip(logits_list, targets_list):
        b = lg.shape[0]
        lgf = lg.astype(jnp.float32)
        d = (lgf[:, 1] - lgf[:, 0]).astype(d_dtype)   # subtract in f32, then cast
        d = jnp.pad(d, (0, n_pad - b))
        t = jnp.pad(tg.astype(jnp.int8), (0, n_pad - b), constant_values=-1)
        d_list.append(d.reshape(rows, _LANES))
        t_list.append(t.reshape(rows, _LANES))
    return jnp.stack(d_list, axis=0), jnp.stack(t_list, axis=0)


@functools.partial(jax.jit, static_argnames=("rows",))
def _forward(logits_tuple, targets_tuple, class_weights, task_w, *, rows):
    """Fused pack -> kernel -> finalize path (one jitted dispatch)."""
    d_stacked, t_stacked = _pack_tasks(logits_tuple, targets_tuple, rows)
    per_task = _fused_weighted_ce(d_stacked, t_stacked, class_weights)
    total = jnp.dot(per_task, task_w)
    return per_task, total


class BinaryClassificationLossPallas:
    """JAX/Pallas port of the PyTorch BinaryClassificationLoss module."""

    def __init__(self, task_weights, class_weights=None, validate_labels=False):
        self.task_weights = dict(task_weights)
        if class_weights is None:
            self.class_weights = jnp.ones((2,), jnp.float32)
        else:
            self.class_weights = jnp.asarray(class_weights, jnp.float32).reshape(2)
        # TODO(synk): torch.unique label validation needs a host sync; validate at
        # data-load time instead (kept behind this off-by-default debug flag).
        self.validate_labels = validate_labels

    def __call__(self, predictions, targets):
        task_names, lg_list, tg_list, max_b = [], [], [], 0
        for task_name, pred_logits in predictions.items():
            if task_name not in targets:
                continue
            target_labels = targets[task_name]
            if pred_logits.shape[0] != target_labels.shape[0]:
                raise ValueError(
                    f"batch mismatch: {pred_logits.shape[0]} vs {target_labels.shape[0]}"
                )
            if pred_logits.shape[1] != 2:
                raise ValueError(
                    f"binary classification expects dim 2, got {pred_logits.shape[1]}"
                )
            if self.validate_labels:  # optional, host-syncing debug path
                uniq = set(int(v) for v in jax.device_get(jnp.unique(target_labels)))
                if not uniq.issubset({0, 1}):
                    raise ValueError(f"labels must be 0/1, got {sorted(uniq)}")
            task_names.append(task_name)
            lg_list.append(pred_logits)
            tg_list.append(target_labels)
            max_b = max(max_b, pred_logits.shape[0])

        losses = {}
        if not task_names:
            losses["total_loss"] = jnp.float32(0.0)
            return losses

        # lane-dense padded layout: rows of 128 samples; rows multiple of 32
        rows = max(1, -(-max_b // _LANES))
        rows = -(-rows // _ROW_ALIGN) * _ROW_ALIGN

        task_w = jnp.asarray(
            [self.task_weights.get(n, 1.0) for n in task_names], jnp.float32)

        per_task, total = _forward(
            tuple(lg_list), tuple(tg_list), self.class_weights, task_w, rows=rows)

        for i, name in enumerate(task_names):
            losses[f"loss_{name}"] = per_task[i]
        losses["total_loss"] = total
        return losses


def _reference_losses(predictions, targets, task_weights, class_weights):
    """Pure-JAX reference matching F.cross_entropy(weight=...) semantics."""
    out, total = {}, jnp.float32(0.0)
    for name, logits in predictions.items():
        if name not in targets:
            continue
        y = targets[name].astype(jnp.int32)
        logp = jax.nn.log_softmax(logits.astype(jnp.float32), axis=-1)
        nll = -jnp.take_along_axis(logp, y[:, None], axis=-1)[:, 0]
        w = class_weights[y]
        loss = jnp.sum(w * nll) / jnp.sum(w)
        out[f"loss_{name}"] = loss
        total = total + jnp.float32(task_weights.get(name, 1.0)) * loss
    out["total_loss"] = total
    return out


if __name__ == "__main__":
    key = jax.random.PRNGKey(0)
    B = 8
    k1, k2, k3, k4 = jax.random.split(key, 4)

    predictions = {
        "1d": jax.random.normal(k1, (B, 2), jnp.float32),
        "5d": jax.random.normal(k2, (B, 2), jnp.float32),
    }
    targets = {
        "1d": jax.random.bernoulli(k3, 0.5, (B,)).astype(jnp.int32),
        "5d": jax.random.bernoulli(k4, 0.5, (B,)).astype(jnp.int32),
    }

    task_weights = {"1d": 1.0, "5d": 0.5}
    class_weights = jnp.array([1.0, 2.0], jnp.float32)

    loss_mod = BinaryClassificationLossPallas(task_weights, class_weights)
    losses = loss_mod(predictions, targets)
    jax.block_until_ready(losses["total_loss"])

    # correctness vs pure-JAX reference
    ref = _reference_losses(predictions, targets, task_weights, class_weights)
    for k in ref:
        a = float(losses[k])
        b = float(ref[k])
        assert abs(a - b) <= 1e-4 + 1e-4 * abs(b), f"{k}: {a} vs {b}"
    assert bool(jnp.isfinite(losses["total_loss"]))

    print("KERNEL_OK")
</pallas_src>

<mosaic_0001>
module attributes {stable_mosaic.version = 11 : i64} {
  func.func @_bce_kernel(%arg0: i32, %arg1: memref<2xf32, #tpu.memory_space<smem>>, %arg2: memref<2x32x128xf32, #tpu.memory_space<vmem>>, %arg3: memref<2x32x128xi8, #tpu.memory_space<vmem>>, %arg4: memref<2x2xf32, #tpu.memory_space<vmem>>) attributes {dimension_semantics = [#tpu.dimension_semantics<arbitrary>], iteration_bounds = array<i64: 1>, scalar_prefetch = 0 : i64, scratch_operands = 0 : i64, tpu.core_type = #tpu.core_type<tc>, window_params = [{transform_indices = @transform_0, window_bounds = array<i64: 2>}, {transform_indices = @transform_1, window_bounds = array<i64: 2, 32, 128>}, {transform_indices = @transform_2, window_bounds = array<i64: 2, 32, 128>}, {pipeline_mode = #tpu.pipeline_mode<synchronous>, transform_indices = @transform_3, window_bounds = array<i64: 2, 2>}]} {
    %c0_i32 = arith.constant 0 : i32
    %0 = arith.cmpi eq, %arg0, %c0_i32 : i32
    %1 = arith.extui %0 : i1 to i32
    %c0_i32_0 = arith.constant 0 : i32
    %2 = arith.cmpi ne, %1, %c0_i32_0 : i32
    scf.if %2 {
      %cst_24 = arith.constant 0.000000e+00 : f32
      %47 = vector.broadcast %cst_24 : f32 to vector<2x2xf32>
      %c0_25 = arith.constant 0 : index
      %c0_26 = arith.constant 0 : index
      %48 = vector.load %arg4[%c0_25, %c0_26] : memref<2x2xf32, #tpu.memory_space<vmem>>, vector<2x2xf32>
      tpu.vector_store %arg4[%c0_25, %c0_26], %47 {strides = array<i32>} : memref<2x2xf32, #tpu.memory_space<vmem>>, vector<2x2xf32>,
    } else {
    }
    %c0 = arith.constant 0 : index
    %c0_1 = arith.constant 0 : index
    %c0_2 = arith.constant 0 : index
    %3 = vector.load %arg2[%c0, %c0_1, %c0_2] : memref<2x32x128xf32, #tpu.memory_space<vmem>>, vector<2x32x128xf32>
    %c0_3 = arith.constant 0 : index
    %c0_4 = arith.constant 0 : index
    %c0_5 = arith.constant 0 : index
    %4 = vector.load %arg3[%c0_3, %c0_4, %c0_5] : memref<2x32x128xi8, #tpu.memory_space<vmem>>, vector<2x32x128xi8>
    %5 = arith.extsi %4 : vector<2x32x128xi8> to vector<2x32x128xi32>
    %c1_i32 = arith.constant 1 : i32
    %6 = vector.broadcast %c1_i32 : i32 to vector<2x32x128xi32>
    %7 = arith.cmpi eq, %5, %6 : vector<2x32x128xi32>
    %c0_i32_6 = arith.constant 0 : i32
    %8 = vector.broadcast %c0_i32_6 : i32 to vector<2x32x128xi32>
    %9 = arith.cmpi sge, %5, %8 : vector<2x32x128xi32>
    %cst = arith.constant 0.000000e+00 : f32
    %10 = vector.broadcast %cst : f32 to vector<2x32x128xf32>
    %11 = arith.subf %10, %3 : vector<2x32x128xf32>
    %12 = arith.select %7, %11, %3 : vector<2x32x128xi1>, vector<2x32x128xf32>
    %cst_7 = arith.constant 0.000000e+00 : f32
    %13 = vector.broadcast %cst_7 : f32 to vector<2x32x128xf32>
    %14 = arith.maximumf %12, %13 : vector<2x32x128xf32>
    %15 = math.absf %12 : vector<2x32x128xf32>
    %cst_8 = arith.constant 0.000000e+00 : f32
    %16 = vector.broadcast %cst_8 : f32 to vector<2x32x128xf32>
    %17 = arith.subf %16, %15 : vector<2x32x128xf32>
    %18 = math.exp %17 : vector<2x32x128xf32>
    %cst_9 = arith.constant 1.000000e+00 : f32
    %19 = vector.broadcast %cst_9 : f32 to vector<2x32x128xf32>
    %20 = arith.addf %19, %18 : vector<2x32x128xf32>
    %21 = math.log %20 : vector<2x32x128xf32>
    %22 = arith.addf %14, %21 : vector<2x32x128xf32>
    %c0_10 = arith.constant 0 : index
    %23 = memref.load %arg1[%c0_10] : memref<2xf32, #tpu.memory_space<smem>>
    %c1 = arith.constant 1 : index
    %24 = memref.load %arg1[%c1] : memref<2xf32, #tpu.memory_space<smem>>
    %25 = vector.broadcast %24 : f32 to vector<2x32x128xf32>
    %26 = vector.broadcast %23 : f32 to vector<2x32x128xf32>
    %27 = arith.select %7, %25, %26 : vector<2x32x128xi1>, vector<2x32x128xf32>
    %cst_11 = arith.constant 0.000000e+00 : f32
    %28 = vector.broadcast %cst_11 : f32 to vector<2x32x128xf32>
    %29 = arith.select %9, %27, %28 : vector<2x32x128xi1>, vector<2x32x128xf32>
    %30 = arith.mulf %29, %22 : vector<2x32x128xf32>
    %cst_12 = arith.constant dense<0.000000e+00> : vector<2x128xf32>
    %31 = vector.multi_reduction <add>, %30, %cst_12 [1] : vector<2x32x128xf32> to vector<2x128xf32>
    %cst_13 = arith.constant dense<0.000000e+00> : vector<2xf32>
    %32 = vector.multi_reduction <add>, %31, %cst_13 [1] : vector<2x128xf32> to vector<2xf32>
    %cst_14 = arith.constant dense<0.000000e+00> : vector<2x128xf32>
    %33 = vector.multi_reduction <add>, %29, %cst_14 [1] : vector<2x32x128xf32> to vector<2x128xf32>
    %cst_15 = arith.constant dense<0.000000e+00> : vector<2xf32>
    %34 = vector.multi_reduction <add>, %33, %cst_15 [1] : vector<2x128xf32> to vector<2xf32>
    %c0_16 = arith.constant 0 : index
    %c0_17 = arith.constant 0 : index
    %35 = vector.load %arg4[%c0_16, %c0_17] : memref<2x2xf32, #tpu.memory_space<vmem>>, vector<1x2xf32>
    %36 = vector.shape_cast %35 : vector<1x2xf32> to vector<2xf32>
    %37 = arith.addf %36, %32 : vector<2xf32>
    %c0_18 = arith.constant 0 : index
    %c0_19 = arith.constant 0 : index
    %38 = vector.load %arg4[%c0_18, %c0_19] : memref<2x2xf32, #tpu.memory_space<vmem>>, vector<1x2xf32>
    %39 = vector.shape_cast %38 : vector<1x2xf32> to vector<2xf32>
    %40 = vector.shape_cast %37 : vector<2xf32> to vector<1x2xf32>
    tpu.vector_store %arg4[%c0_18, %c0_19], %40 {strides = array<i32>} : memref<2x2xf32, #tpu.memory_space<vmem>>, vector<1x2xf32>,
    %c1_20 = arith.constant 1 : index
    %c0_21 = arith.constant 0 : index
    %41 = vector.load %arg4[%c1_20, %c0_21] : memref<2x2xf32, #tpu.memory_space<vmem>>, vector<1x2xf32>
    %42 = vector.shape_cast %41 : vector<1x2xf32> to vector<2xf32>
    %43 = arith.addf %42, %34 : vector<2xf32>
    %c1_22 = arith.constant 1 : index
    %c0_23 = arith.constant 0 : index
    %44 = vector.load %arg4[%c1_22, %c0_23] : memref<2x2xf32, #tpu.memory_space<vmem>>, vector<1x2xf32>
    %45 = vector.shape_cast %44 : vector<1x2xf32> to vector<2xf32>
    %46 = vector.shape_cast %43 : vector<2xf32> to vector<1x2xf32>
    tpu.vector_store %arg4[%c1_22, %c0_23], %46 {strides = array<i32>} : memref<2x2xf32, #tpu.memory_space<vmem>>, vector<1x2xf32>,
    return
  }
  func.func @transform_0(%arg0: i32) -> i32 {
    %c0_i32 = arith.constant 0 : i32
    %c0_i32_0 = arith.constant 0 : i32
    return %c0_i32 : i32
  }
  func.func @transform_1(%arg0: i32) -> (i32, i32, i32) {
    %c0_i32 = arith.constant 0 : i32
    %c0_i32_0 = arith.constant 0 : i32
    %c0_i32_1 = arith.constant 0 : i32
    return %c0_i32, %arg0, %c0_i32_0 : i32, i32, i32
  }
  func.func @transform_2(%arg0: i32) -> (i32, i32, i32) {
    %c0_i32 = arith.constant 0 : i32
    %c0_i32_0 = arith.constant 0 : i32
    %c0_i32_1 = arith.constant 0 : i32
    return %c0_i32, %arg0, %c0_i32_0 : i32, i32, i32
  }
  func.func @transform_3(%arg0: i32) -> (i32, i32) {
    %c0_i32 = arith.constant 0 : i32
    %c0_i32_0 = arith.constant 0 : i32
    %c0_i32_1 = arith.constant 0 : i32
    return %c0_i32, %c0_i32_0 : i32, i32
  }
}

</mosaic_0001>

<llo_original>
// kernel: _forward.1
$region0: #{_forward.1}
  #allocation0 [shape = 'u32[]', space=smem, size = 0x4, offset = 0x4, fixed_abs, tag = 'smem constant byte address 0x4 - core index']
  #allocation1 [shape = 'u32[144,128]{1,0:T(1,128)}', space=vmem, size = 0x12000, scoped, tag = 'internal scratch']
  %s0 = inlined_call_operand.vmem [shape: f32[2], index: 0, kind: input, shape index: {}]
  %s1 = inlined_call_operand.vmem [shape: f32[2,32,128], index: 1, kind: input, shape index: {}]
  %s2 = inlined_call_operand.vmem [shape: s8[2,32,128], index: 2, kind: input, shape index: {}]
  %s3 = inlined_call_operand.vmem [shape: f32[2,2], index: 3, kind: output, shape index: {}]
  %s4 = sld [smem:[#allocation0]]
  $region30: #{_forward.1} parent=0
    _
  %s6 = ssub.s32 1, %s4
  %s7 = scalar_select 0, %s6, %s4
  $region1: #{_forward.1} parent=0
    #allocation2 [shape = 'u8[512]{0}', space=smem, size = 0x200, scoped, tag = 'input window, operand 0, single buffered']
    #allocation3 [shape = 's32[1]{0}', space=sflag, size = 0x4, scoped, tag = 'scoped memory for _forward.1']
    %8 = vsyncpa [#allocation3], 0
    // Predicated region
    $region2: #{_forward.1} parent=1 // pred_check
      _
    $region3: #{_forward.1} parent=1 // pred_check_branch
      %10 = sbr.rel (0) target = $region5
    $region4: #{_forward.1} parent=1 // pred_region
      %s12 = ssub.s32 16, 16
      %13 = vsyncadd [#allocation3], %s12
      %s15 = sshll.u32 %s0, 4
      %s16 = int_to_ptr.vmem [resolvable:$true] %s15
      %18 = dma.vmem_to_smem %s16, 16, [#allocation2], [#allocation3]
    $region5: #{_forward.1} parent=1 // pred_fallthru
      _
    // Predicated region
    $region6: #{_forward.1} parent=1 // pred_check
      _
    $region7: #{_forward.1} parent=1 // pred_check_branch
      %20 = sbr.rel (0) target = $region9
    $region8: #{_forward.1} parent=1 // pred_region
      _
    $region9: #{_forward.1} parent=1 // pred_fallthru
      _
    // Predicated region
    $region10: #{_forward.1} parent=1 // pred_check
      _
    $region11: #{_forward.1} parent=1 // pred_check_branch
      %22 = sbr.rel (0) target = $region13
    $region12: #{_forward.1} parent=1 // pred_region
      _
    $region13: #{_forward.1} parent=1 // pred_fallthru
      _
    // Predicated region
    $region14: #{_forward.1} parent=1 // pred_check
      _
    $region15: #{_forward.1} parent=1 // pred_check_branch
      %24 = sbr.rel (0) target = $region17
    $region16: #{_forward.1} parent=1 // pred_region
      %25 = dma.done [#allocation3], 16
    $region17: #{_forward.1} parent=1 // pred_fallthru
      _
    %26 = sfence
    %p27 = scmp.eq.s32.totalorder 0, 0
    // Predicated region
    $region18: #{_forward.1} parent=1 // pred_check
      %p28 = pneg %p27
    $region19: #{_forward.1} parent=1 // pred_check_branch
      %30 = sbr.rel (%p28) target = $region21
    $region20: #{_forward.1} parent=1 // pred_region
      %vm31 = vcmask 9216
      %32 = vst.msk [vmem:[%s3] sm:$0x3] %vm31, 0.0
    $region21: #{_forward.1} parent=1 // pred_fallthru
      _
    %v33 = vld [vmem:[%s1] sm:$0xff]
    %v34 = vld [vmem:[%s1 + $0x8] sm:$0xff]
    %v35 = vld [vmem:[%s1 + $0x10] sm:$0xff]
    %v36 = vld [vmem:[%s1 + $0x18] sm:$0xff]
    %v37 = vld [vmem:[%s1 + $0x20] sm:$0xff]
    %v38 = vld [vmem:[%s1 + $0x28] sm:$0xff]
    %v39 = vld [vmem:[%s1 + $0x30] sm:$0xff]
    %v40 = vld [vmem:[%s1 + $0x38] sm:$0xff]
    %v41 = vld [vmem:[%s2] sm:$0xff]
    %v42 = vld [vmem:[%s2 + $0x8] sm:$0xff]
    %v43 = vunpack.c.0.s8 %v41
    %v44 = vunpack.c.1.s8 %v41
    %v45 = vunpack.c.2.s8 %v41
    %v46 = vunpack.c.3.s8 %v41
    %v47 = vunpack.c.0.s8 %v42
    %v48 = vunpack.c.1.s8 %v42
    %v49 = vunpack.c.2.s8 %v42
    %v50 = vunpack.c.3.s8 %v42
    %vm51 = vcmp.eq.s32.totalorder %v43, 1
    %vm52 = vcmp.eq.s32.totalorder %v44, 1
    %vm53 = vcmp.eq.s32.totalorder %v45, 1
    %vm54 = vcmp.eq.s32.totalorder %v46, 1
    %vm55 = vcmp.eq.s32.totalorder %v47, 1
    %vm56 = vcmp.eq.s32.totalorder %v48, 1
    %vm57 = vcmp.eq.s32.totalorder %v49, 1
    %vm58 = vcmp.eq.s32.totalorder %v50, 1
    %vm59 = vcmp.ge.s32.totalorder %v43, 0
    %vm60 = vcmp.ge.s32.totalorder %v44, 0
    %vm61 = vcmp.ge.s32.totalorder %v45, 0
    %vm62 = vcmp.ge.s32.totalorder %v46, 0
    %vm63 = vcmp.ge.s32.totalorder %v47, 0
    %vm64 = vcmp.ge.s32.totalorder %v48, 0
    %vm65 = vcmp.ge.s32.totalorder %v49, 0
    %vm66 = vcmp.ge.s32.totalorder %v50, 0
    %v67 = vsub.f32 0.0, %v33
    %v68 = vsub.f32 0.0, %v34
    %v69 = vsub.f32 0.0, %v35
    %v70 = vsub.f32 0.0, %v36
    %v71 = vsub.f32 0.0, %v37
    %v72 = vsub.f32 0.0, %v38
    %v73 = vsub.f32 0.0, %v39
    %v74 = vsub.f32 0.0, %v40
    %v75 = vsel %vm51, %v67, %v33
    %v76 = vsel %vm52, %v68, %v34
    %v77 = vsel %vm53, %v69, %v35
    %v78 = vsel %vm54, %v70, %v36
    %v79 = vsel %vm55, %v71, %v37
    %v80 = vsel %vm56, %v72, %v38
    %v81 = vsel %vm57, %v73, %v39
    %v82 = vsel %vm58, %v74, %v40
    %v83 = vmax.f32 %v75, 0.0
    %v84 = vmax.f32 %v76, 0.0
    %v85 = vmax.f32 %v77, 0.0
    %v86 = vmax.f32 %v78, 0.0
    %v87 = vmax.f32 %v79, 0.0
    %v88 = vmax.f32 %v80, 0.0
    %v89 = vmax.f32 %v81, 0.0
    %v90 = vmax.f32 %v82, 0.0
    %v91 = vand.u32 2147483647, %v75
    %v92 = vand.u32 2147483647, %v76
    %v93 = vand.u32 2147483647, %v77
    %v94 = vand.u32 2147483647, %v78
    %v95 = vand.u32 2147483647, %v79
    %v96 = vand.u32 2147483647, %v80
    %v97 = vand.u32 2147483647, %v81
    %v98 = vand.u32 2147483647, %v82
    %v99 = vsub.f32 0.0, %v91
    %v100 = vsub.f32 0.0, %v92
    %v101 = vsub.f32 0.0, %v93
    %v102 = vsub.f32 0.0, %v94
    %v103 = vsub.f32 0.0, %v95
    %v104 = vsub.f32 0.0, %v96
    %v105 = vsub.f32 0.0, %v97
    %v106 = vsub.f32 0.0, %v98
    %v107 = vmul.f32 %v99, 1.442695
    %v108 = vpow.pop %v107
    %v109 = vmul.f32 %v100, 1.442695
    %v110 = vpow.pop %v109
    %v111 = vmul.f32 %v101, 1.442695
    %v112 = vpow.pop %v111
    %v113 = vmul.f32 %v102, 1.442695
    %v114 = vpow.pop %v113
    %v115 = vmul.f32 %v103, 1.442695
    %v116 = vpow.pop %v115
    %v117 = vmul.f32 %v104, 1.442695
    %v118 = vpow.pop %v117
    %v119 = vmul.f32 %v105, 1.442695
    %v120 = vpow.pop %v119
    %v121 = vmul.f32 %v106, 1.442695
    %v122 = vpow.pop %v121
    %v123 = vadd.f32 %v108, 1.0
    %v124 = vadd.f32 %v110, 1.0
    %v125 = vadd.f32 %v112, 1.0
    %v126 = vadd.f32 %v114, 1.0
    %v127 = vadd.f32 %v116, 1.0
    %v128 = vadd.f32 %v118, 1.0
    %v129 = vadd.f32 %v120, 1.0
    %v130 = vadd.f32 %v122, 1.0
    %v131 = vlog2.pop %v123
    %v132 = vmul.f32 %v131, 0.6931472
    %v133 = vlog2.pop %v124
    %v134 = vmul.f32 %v133, 0.6931472
    %v135 = vlog2.pop %v125
    %v136 = vmul.f32 %v135, 0.6931472
    %v137 = vlog2.pop %v126
    %v138 = vmul.f32 %v137, 0.6931472
    %v139 = vlog2.pop %v127
    %v140 = vmul.f32 %v139, 0.6931472
    %v141 = vlog2.pop %v128
    %v142 = vmul.f32 %v141, 0.6931472
    %v143 = vlog2.pop %v129
    %v144 = vmul.f32 %v143, 0.6931472
    %v145 = vlog2.pop %v130
    %v146 = vmul.f32 %v145, 0.6931472
    %v147 = vadd.f32 %v83, %v132
    %v148 = vadd.f32 %v84, %v134
    %v149 = vadd.f32 %v85, %v136
    %v150 = vadd.f32 %v86, %v138
    %v151 = vadd.f32 %v87, %v140
    %v152 = vadd.f32 %v88, %v142
    %v153 = vadd.f32 %v89, %v144
    %v154 = vadd.f32 %v90, %v146
    %s155 = sld [smem:[#allocation2]]
    %s156 = sld [smem:[#allocation2 + $0x1]]
    %v157 = vstv %s156
    %v158 = vstv %s155
    %v159 = vsel %vm51, %v157, %v158
    %v160 = vsel %vm52, %v157, %v158
    %v161 = vsel %vm53, %v157, %v158
    %v162 = vsel %vm54, %v157, %v158
    %v163 = vsel %vm55, %v157, %v158
    %v164 = vsel %vm56, %v157, %v158
    %v165 = vsel %vm57, %v157, %v158
    %v166 = vsel %vm58, %v157, %v158
    %v167 = vsel %vm59, %v159, 0.0
    %v168 = vsel %vm60, %v160, 0.0
    %v169 = vsel %vm61, %v161, 0.0
    %v170 = vsel %vm62, %v162, 0.0
    %v171 = vsel %vm63, %v163, 0.0
    %v172 = vsel %vm64, %v164, 0.0
    %v173 = vsel %vm65, %v165, 0.0
    %v174 = vsel %vm66, %v166, 0.0
    %v175 = vmul.f32 %v167, %v147
    %v176 = vmul.f32 %v168, %v148
    %v177 = vmul.f32 %v169, %v149
    %v178 = vmul.f32 %v170, %v150
    %v179 = vmul.f32 %v171, %v151
    %v180 = vmul.f32 %v172, %v152
    %v181 = vmul.f32 %v173, %v153
    %v182 = vmul.f32 %v174, %v154
    %v183 = vadd.f32 %v175, %v176
    %v184 = vadd.f32 %v183, %v177
    %v185 = vadd.f32 %v184, %v178
    %v186 = vrot.slane %v185, 4
    %v187 = vadd.f32 %v185, %v186
    %v188 = vrot.slane %v187, 2
    %v189 = vadd.f32 %v187, %v188
    %v190 = vrot.slane %v189, 1
    %v191 = vadd.f32 %v189, %v190
    %v192 = vadd.f32 %v179, %v180
    %v193 = vadd.f32 %v192, %v181
    %v194 = vadd.f32 %v193, %v182
    %v195 = vrot.slane %v194, 4
    %v196 = vadd.f32 %v194, %v195
    %v197 = vrot.slane %v196, 2
    %v198 = vadd.f32 %v196, %v197
    %v199 = vrot.slane %v198, 1
    %v200 = vadd.f32 %v198, %v199
    %vm203 = vcmask 1041409
    %v204 = vsel %vm203, %v200, %v191
    %vm206 = vcmask 1041408
    %v207 = vsel %vm206, %v204, 0.0
    %208 = vadd.xlane.f32.xlu0 %v207
    %v209 = vpop.xlane.xlu0 %208
    %v210 = vadd.f32 %v167, %v168
    %v211 = vadd.f32 %v210, %v169
    %v212 = vadd.f32 %v211, %v170
    %v213 = vrot.slane %v212, 4
    %v214 = vadd.f32 %v212, %v213
    %v215 = vrot.slane %v214, 2
    %v216 = vadd.f32 %v214, %v215
    %v217 = vrot.slane %v216, 1
    %v218 = vadd.f32 %v216, %v217
    %v219 = vadd.f32 %v171, %v172
    %v220 = vadd.f32 %v219, %v173
    %v221 = vadd.f32 %v220, %v174
    %v222 = vrot.slane %v221, 4
    %v223 = vadd.f32 %v221, %v222
    %v224 = vrot.slane %v223, 2
    %v225 = vadd.f32 %v223, %v224
    %v226 = vrot.slane %v225, 1
    %v227 = vadd.f32 %v225, %v226
    %v230 = vsel %vm203, %v227, %v218
    %v232 = vsel %vm206, %v230, 0.0
    %233 = vadd.xlane.f32.xlu0 %v232
    %v234 = vpop.xlane.xlu0 %233
    %v235 = vld [vmem:[%s3] sm:$0x1]
    %v237 = vlaneseq
    %v238 = vand.u32 %v237, 127
    %v239 = vlaneseq
    %v240 = vshrl.u32 %v239, 7
    %v241 = vsub.s32 %v238, %v240
    %v242 = vrot.slane %v209, %v241
    %v244 = vadd.f32 %v235, %v242
    %vm245 = vcmask 8192
    %246 = vst.msk [vmem:[%s3] sm:$0x1] %vm245, %v244
    %v247 = vld [vmem:[%s3 + $0x1] sm:$0x1]
    %v249 = vlaneseq
    %v250 = vshrl.u32 %v249, 7
    %v251 = vsub.s32 %v238, %v250
    %v252 = vrot.slane %v234, %v251
    %v254 = vadd.f32 %v247, %v252
    %255 = vst.msk [vmem:[%s3 + $0x1] sm:$0x1] %vm245, %v254
    // Predicated region
    $region22: #{_forward.1} parent=1 // pred_check
      _
    $region23: #{_forward.1} parent=1 // pred_check_branch
      %257 = sbr.rel (0) target = $region25
    $region24: #{_forward.1} parent=1 // pred_region
      _
    $region25: #{_forward.1} parent=1 // pred_fallthru
      _
    // Predicated region
    $region26: #{_forward.1} parent=1 // pred_check
      _
    $region27: #{_forward.1} parent=1 // pred_check_branch
      %259 = sbr.rel (0) target = $region29
    $region28: #{_forward.1} parent=1 // pred_region
      _
    $region29: #{_forward.1} parent=1 // pred_fallthru
      _
    %260 = vsyncpa [#allocation3], 1

</llo_original>
